<compile_context>
chip_gen: v6e
topology: v6e:2x2x1
jax: 0.10.0
libtpu: 0.0.40
codegen_flags: <defaults>
</compile_context>

<pallas_src>
import jax
import jax.numpy as jnp
from jax.experimental import pallas as pl
from jax.experimental.pallas import tpu as pltpu

D = 768           # hidden size of the backbone
NUM_LABELS = 2    # {'valence_mean', 'arousal_mean'}


def _compute_logits(x_ref, w_ref, b_ref):
    # x_ref: [tb, D] CLS hidden states in the backbone's native dtype;
    # w_ref: [L, D] torch Linear layout (lane-dense); b_ref: [1, L] f32.
    # Per-tile cast to f32 happens here (hidden under the x DMA).
    x = x_ref[...].astype(jnp.float32)
    w = w_ref[...].astype(jnp.float32)
    cols = [
        jnp.sum(x * w[l:l + 1, :], axis=-1, keepdims=True)    # [tb, 1]
        for l in range(NUM_LABELS)
    ]
    return jnp.concatenate(cols, axis=-1) + b_ref[...]        # [tb, L] f32


def _head_kernel_infer(x_ref, w_ref, b_ref, logits_ref):
    # Logits-only variant: no label DMA, no EUP/XLU loss work.
    logits_ref[...] = _compute_logits(x_ref, w_ref, b_ref).astype(logits_ref.dtype)


def _head_kernel_train(x_ref, w_ref, b_ref, lab_ref, logits_ref, nll_ref):
    logits = _compute_logits(x_ref, w_ref, b_ref)             # [tb, L] f32
    logits_ref[...] = logits.astype(logits_ref.dtype)

    # Numerically-stable log-softmax + per-row NLL.  Everything is row-local,
    # so padded remainder rows cannot contaminate real rows and their
    # writeback is clipped by Pallas -> no explicit mask needed.
    m = jnp.max(logits, axis=-1, keepdims=True)
    z = logits - m
    lse = jnp.log(jnp.sum(jnp.exp(z), axis=-1, keepdims=True))
    logp = z - lse                                            # [tb, L]

    cls_ids = jax.lax.broadcasted_iota(jnp.int32, logp.shape, 1)
    onehot = (cls_ids == lab_ref[...]).astype(jnp.float32)    # [tb, L]
    # TODO(synk): torch CrossEntropyLoss ignore_index=-100 is not honored;
    # out-of-range labels contribute 0 to the numerator but still count in
    # the mean denominator.
    nll_ref[...] = -jnp.sum(onehot * logp, axis=-1, keepdims=True)   # [tb, 1]


def _pick_tile(B, block_b):
    # Small batch: single tile (block dims == full array dims are always
    # legal).  Large batch: multiple-of-128 tile + cdiv grid with a clipped
    # remainder block -> pipelined DMA and bounded VMEM for any B.
    if B <= 128 or B <= block_b:
        return B
    return max(128, (min(block_b, 2048) // 128) * 128)


def custom_model_forward(hidden_states, w, b, labels=None, *, block_b=1024):
    """hidden_states: [B, T, D] backbone output kept in its NATIVE dtype
    (typically bf16) -- no wrapper-side f32 copy of the full tensor.
    w: [NUM_LABELS, D] (torch Linear weight layout), b: [NUM_LABELS].
    Returns (loss_or_None, logits[B, NUM_LABELS])."""
    B, T, d = hidden_states.shape
    assert d == D

    # Layout-only reshape [B, T, D] -> [B, T*D]; the x BlockSpec DMAs only
    # columns [0, D) of each row == hidden_states[:, 0, :] (CLS slice fused
    # into the kernel DMA; no materialized x_cls / f32 copy in HBM).
    hs2d = hidden_states.reshape(B, T * D)
    x_bytes = hs2d.dtype.itemsize
    w2d = w.astype(jnp.float32)                           # 6 KiB, irrelevant
    b2d = b.astype(jnp.float32).reshape(1, NUM_LABELS)

    tb = _pick_tile(B, block_b)
    grid = (pl.cdiv(B, tb),)

    # tb=1024 bf16 double-buffered ~3 MiB; the explicit limit lets callers use
    # block_b=2048 (12 MiB f32 double-buffered) without tripping v5e's 16 MiB
    # default scoped VMEM, while staying within v7x's 64 MiB physical VMEM.
    cparams = pltpu.CompilerParams(
        dimension_semantics=("parallel",),   # no carried reduction ->
                                             # v7x dual-TC sharding on both paths
        vmem_limit_bytes=32 * 1024 * 1024)

    x_spec = pl.BlockSpec((tb, D), lambda i: (i, 0))      # CLS slab only
    # TODO(synk): pipeline_mode=pl.Buffered(3) on x_spec is a cheap experiment
    # for the strided CLS-slab DMA; keep only if it measures >= 5 sigma.
    w_spec = pl.BlockSpec((NUM_LABELS, D), lambda i: (0, 0))
    b_spec = pl.BlockSpec((1, NUM_LABELS), lambda i: (0, 0))
    logits_spec = pl.BlockSpec((tb, NUM_LABELS), lambda i: (i, 0))
    # TODO(synk): a lane-dense [L, B] logits output would avoid the width-2
    # masked stores, but needs an in-kernel (tb,2)->(2,tb) transpose or an MXU
    # matmul; at ~0.3% of the x DMA bytes it is kept in torch layout instead.

    base_bytes = (B * D * x_bytes + NUM_LABELS * D * 4 + NUM_LABELS * 4
                  + B * NUM_LABELS * 4)
    base_flops = 2 * B * D * NUM_LABELS + B * NUM_LABELS

    if labels is None:
        logits = pl.pallas_call(
            _head_kernel_infer,
            grid=grid,
            in_specs=[x_spec, w_spec, b_spec],
            out_specs=logits_spec,
            out_shape=jax.ShapeDtypeStruct((B, NUM_LABELS), jnp.float32),
            compiler_params=cparams,
            cost_estimate=pl.CostEstimate(
                flops=base_flops, transcendentals=0,
                bytes_accessed=base_bytes),
        )(hs2d, w2d, b2d)
        return None, logits

    lab2d = labels.astype(jnp.int32).reshape(B, 1)
    lab_spec = pl.BlockSpec((tb, 1), lambda i: (i, 0))
    nll_spec = pl.BlockSpec((tb, 1), lambda i: (i, 0))

    logits, nll = pl.pallas_call(
        _head_kernel_train,
        grid=grid,
        in_specs=[x_spec, w_spec, b_spec, lab_spec],
        out_specs=(logits_spec, nll_spec),
        out_shape=(jax.ShapeDtypeStruct((B, NUM_LABELS), jnp.float32),
                   jax.ShapeDtypeStruct((B, 1), jnp.float32)),
        compiler_params=cparams,
        cost_estimate=pl.CostEstimate(
            flops=base_flops + 8 * B * NUM_LABELS,
            transcendentals=B * (NUM_LABELS + 1),
            bytes_accessed=base_bytes + 8 * B),
    )(hs2d, w2d, b2d, lab2d)

    # Mean cross-entropy finalized in the wrapper (trivial [B,1] reduction);
    # keeping the reduction out of the grid keeps the loop fully parallel.
    loss = jnp.sum(nll) * (1.0 / B)
    return loss, logits


if __name__ == "__main__":
    key = jax.random.PRNGKey(0)
    k_hid, k_w, k_b, k_lab = jax.random.split(key, 4)

    B, T = 2, 8  # small shapes; D=768 fixed by Linear(768, 2)

    # TODO(synk): the pretrained AutoModel backbone is not translatable; its
    # [B, T, 768] hidden-state output is simulated deterministically here in
    # bf16 (the backbone's native dtype -- no wrapper-side f32 copy).
    hidden_states = jax.random.normal(
        k_hid, (B, T, D), dtype=jnp.float32).astype(jnp.bfloat16)

    # torch Linear(768, 2): weight [2, 768], bias [2] (kept in torch layout).
    bound = 1.0 / (D ** 0.5)
    w = jax.random.uniform(k_w, (NUM_LABELS, D), jnp.float32, -bound, bound)
    b = jax.random.uniform(k_b, (NUM_LABELS,), jnp.float32, -bound, bound)
    labels = jax.random.randint(k_lab, (B,), 0, NUM_LABELS)

    # TODO(synk): training-mode Dropout(0.5) is stochastic; eval/identity
    # semantics are used here.
    fwd = jax.jit(custom_model_forward, static_argnames=("block_b",))
    loss, logits = fwd(hidden_states, w, b, labels=labels)
    _, logits_infer = fwd(hidden_states, w, b, labels=None)
    jax.block_until_ready((loss, logits, logits_infer))

    # Reference in plain JAX (explicit f32 sum to match kernel math exactly).
    def _ref(hs, labs):
        x_cls = hs[:, 0, :].astype(jnp.float32)
        rl = jnp.sum(x_cls[:, None, :] * w[None, :, :], axis=-1) + b
        lp = jax.nn.log_softmax(rl, axis=-1)
        return rl, -jnp.mean(lp[jnp.arange(hs.shape[0]), labs])

    ref_logits, ref_loss = _ref(hidden_states, labels)
    assert jnp.allclose(logits, ref_logits, atol=1e-3, rtol=1e-3)
    assert jnp.allclose(logits_infer, ref_logits, atol=1e-3, rtol=1e-3)
    assert jnp.allclose(loss, ref_loss, atol=1e-3, rtol=1e-3)

    # Exercise the multi-tile + clipped-remainder path (cdiv grid): B=200, tb=128.
    B2, T2 = 200, 4
    hs2 = jax.random.normal(jax.random.PRNGKey(1), (B2, T2, D),
                            dtype=jnp.float32).astype(jnp.bfloat16)
    lab2 = jax.random.randint(jax.random.PRNGKey(2), (B2,), 0, NUM_LABELS)
    loss2, logits2 = fwd(hs2, w, b, labels=lab2, block_b=128)
    jax.block_until_ready((loss2, logits2))
    ref_logits2, ref_loss2 = _ref(hs2, lab2)
    assert jnp.allclose(logits2, ref_logits2, atol=1e-3, rtol=1e-3)
    assert jnp.allclose(loss2, ref_loss2, atol=1e-3, rtol=1e-3)

    print("KERNEL_OK")
</pallas_src>

<mosaic_0001>
module attributes {stable_mosaic.version = 11 : i64} {
  func.func @_head_kernel_train(%arg0: i32, %arg1: memref<2x768xbf16, #tpu.memory_space<vmem>>, %arg2: memref<2x768xf32, #tpu.memory_space<vmem>>, %arg3: memref<1x2xf32, #tpu.memory_space<vmem>>, %arg4: memref<2x1xi32, #tpu.memory_space<vmem>>, %arg5: memref<2x2xf32, #tpu.memory_space<vmem>>, %arg6: memref<2x1xf32, #tpu.memory_space<vmem>>) attributes {dimension_semantics = [#tpu.dimension_semantics<parallel>], iteration_bounds = array<i64: 1>, scalar_prefetch = 0 : i64, scratch_operands = 0 : i64, tpu.core_type = #tpu.core_type<tc>, window_params = [{transform_indices = @transform_0, window_bounds = array<i64: 2, 768>}, {pipeline_mode = #tpu.pipeline_mode<synchronous>, transform_indices = @transform_1, window_bounds = array<i64: 2, 768>}, {pipeline_mode = #tpu.pipeline_mode<synchronous>, transform_indices = @transform_2, window_bounds = array<i64: 1, 2>}, {transform_indices = @transform_3, window_bounds = array<i64: 2, 1>}, {transform_indices = @transform_4, window_bounds = array<i64: 2, 2>}, {transform_indices = @transform_5, window_bounds = array<i64: 2, 1>}]} {
    %c0 = arith.constant 0 : index
    %c0_0 = arith.constant 0 : index
    %0 = vector.load %arg1[%c0, %c0_0] : memref<2x768xbf16, #tpu.memory_space<vmem>>, vector<2x768xbf16>
    %1 = arith.extf %0 : vector<2x768xbf16> to vector<2x768xf32>
    %c0_1 = arith.constant 0 : index
    %c0_2 = arith.constant 0 : index
    %2 = vector.load %arg2[%c0_1, %c0_2] : memref<2x768xf32, #tpu.memory_space<vmem>>, vector<2x768xf32>
    %3 = vector.extract_strided_slice %2 {offsets = [0, 0], sizes = [1, 768], strides = [1, 1]} : vector<2x768xf32> to vector<1x768xf32>
    %4 = vector.broadcast %3 : vector<1x768xf32> to vector<2x768xf32>
    %5 = arith.mulf %1, %4 : vector<2x768xf32>
    %cst = arith.constant dense<0.000000e+00> : vector<2xf32>
    %6 = vector.multi_reduction <add>, %5, %cst [1] : vector<2x768xf32> to vector<2xf32>
    %7 = vector.shape_cast %6 : vector<2xf32> to vector<2x1xf32>
    %8 = vector.extract_strided_slice %2 {offsets = [1, 0], sizes = [1, 768], strides = [1, 1]} : vector<2x768xf32> to vector<1x768xf32>
    %9 = vector.broadcast %8 : vector<1x768xf32> to vector<2x768xf32>
    %10 = arith.mulf %1, %9 : vector<2x768xf32>
    %cst_3 = arith.constant dense<0.000000e+00> : vector<2xf32>
    %11 = vector.multi_reduction <add>, %10, %cst_3 [1] : vector<2x768xf32> to vector<2xf32>
    %12 = vector.shape_cast %11 : vector<2xf32> to vector<2x1xf32>
    %13 = tpu.concatenate %7, %12 in 1 : vector<2x1xf32>, vector<2x1xf32> -> vector<2x2xf32>
    %c0_4 = arith.constant 0 : index
    %c0_5 = arith.constant 0 : index
    %14 = vector.load %arg3[%c0_4, %c0_5] : memref<1x2xf32, #tpu.memory_space<vmem>>, vector<1x2xf32>
    %15 = vector.broadcast %14 : vector<1x2xf32> to vector<2x2xf32>
    %16 = arith.addf %13, %15 : vector<2x2xf32>
    %c0_6 = arith.constant 0 : index
    %c0_7 = arith.constant 0 : index
    %17 = vector.load %arg5[%c0_6, %c0_7] : memref<2x2xf32, #tpu.memory_space<vmem>>, vector<2x2xf32>
    tpu.vector_store %arg5[%c0_6, %c0_7], %16 {strides = array<i32>} : memref<2x2xf32, #tpu.memory_space<vmem>>, vector<2x2xf32>,
    %cst_8 = arith.constant dense<0xFF800000> : vector<2xf32>
    %18 = vector.multi_reduction <maximumf>, %16, %cst_8 [1] : vector<2x2xf32> to vector<2xf32>
    %19 = vector.shape_cast %18 : vector<2xf32> to vector<2x1xf32>
    %20 = vector.broadcast %19 : vector<2x1xf32> to vector<2x2xf32>
    %21 = arith.subf %16, %20 : vector<2x2xf32>
    %22 = math.exp %21 : vector<2x2xf32>
    %cst_9 = arith.constant dense<0.000000e+00> : vector<2xf32>
    %23 = vector.multi_reduction <add>, %22, %cst_9 [1] : vector<2x2xf32> to vector<2xf32>
    %24 = vector.shape_cast %23 : vector<2xf32> to vector<2x1xf32>
    %25 = math.log %24 : vector<2x1xf32>
    %26 = vector.broadcast %25 : vector<2x1xf32> to vector<2x2xf32>
    %27 = arith.subf %21, %26 : vector<2x2xf32>
    %28 = tpu.iota {dimensions = array<i32: 1>} : vector<2x2xi32>
    %c0_10 = arith.constant 0 : index
    %c0_11 = arith.constant 0 : index
    %29 = vector.load %arg4[%c0_10, %c0_11] : memref<2x1xi32, #tpu.memory_space<vmem>>, vector<2x1xi32>
    %30 = vector.broadcast %29 : vector<2x1xi32> to vector<2x2xi32>
    %31 = arith.cmpi eq, %28, %30 : vector<2x2xi32>
    %32 = arith.extui %31 : vector<2x2xi1> to vector<2x2xi32>
    %33 = arith.sitofp %32 : vector<2x2xi32> to vector<2x2xf32>
    %34 = arith.mulf %33, %27 : vector<2x2xf32>
    %cst_12 = arith.constant dense<0.000000e+00> : vector<2xf32>
    %35 = vector.multi_reduction <add>, %34, %cst_12 [1] : vector<2x2xf32> to vector<2xf32>
    %36 = vector.shape_cast %35 : vector<2xf32> to vector<2x1xf32>
    %cst_13 = arith.constant 0.000000e+00 : f32
    %37 = vector.broadcast %cst_13 : f32 to vector<2x1xf32>
    %38 = arith.subf %37, %36 : vector<2x1xf32>
    %c0_14 = arith.constant 0 : index
    %c0_15 = arith.constant 0 : index
    %39 = vector.load %arg6[%c0_14, %c0_15] : memref<2x1xf32, #tpu.memory_space<vmem>>, vector<2x1xf32>
    tpu.vector_store %arg6[%c0_14, %c0_15], %38 {strides = array<i32>} : memref<2x1xf32, #tpu.memory_space<vmem>>, vector<2x1xf32>,
    return
  }
  func.func @transform_0(%arg0: i32) -> (i32, i32) {
    %c0_i32 = arith.constant 0 : i32
    %c0_i32_0 = arith.constant 0 : i32
    return %arg0, %c0_i32 : i32, i32
  }
  func.func @transform_1(%arg0: i32) -> (i32, i32) {
    %c0_i32 = arith.constant 0 : i32
    %c0_i32_0 = arith.constant 0 : i32
    %c0_i32_1 = arith.constant 0 : i32
    return %c0_i32, %c0_i32_0 : i32, i32
  }
  func.func @transform_2(%arg0: i32) -> (i32, i32) {
    %c0_i32 = arith.constant 0 : i32
    %c0_i32_0 = arith.constant 0 : i32
    %c0_i32_1 = arith.constant 0 : i32
    return %c0_i32, %c0_i32_0 : i32, i32
  }
  func.func @transform_3(%arg0: i32) -> (i32, i32) {
    %c0_i32 = arith.constant 0 : i32
    %c0_i32_0 = arith.constant 0 : i32
    return %arg0, %c0_i32 : i32, i32
  }
  func.func @transform_4(%arg0: i32) -> (i32, i32) {
    %c0_i32 = arith.constant 0 : i32
    %c0_i32_0 = arith.constant 0 : i32
    return %arg0, %c0_i32 : i32, i32
  }
  func.func @transform_5(%arg0: i32) -> (i32, i32) {
    %c0_i32 = arith.constant 0 : i32
    %c0_i32_0 = arith.constant 0 : i32
    return %arg0, %c0_i32 : i32, i32
  }
}

</mosaic_0001>

<llo_original>
// kernel: custom_model_forward.1
$region0: #{custom_model_forward.1}
  #allocation0 [shape = 'u32[]', space=smem, size = 0x4, offset = 0x4, fixed_abs, tag = 'smem constant byte address 0x4 - core index']
  #allocation1 [shape = 'u32[144,128]{1,0:T(1,128)}', space=vmem, size = 0x12000, scoped, tag = 'internal scratch']
  %s0 = inlined_call_operand.vmem [shape: bf16[2,6144], index: 0, kind: input, shape index: {}]
  %s1 = inlined_call_operand.vmem [shape: f32[2,768], index: 1, kind: input, shape index: {}]
  %s2 = inlined_call_operand.vmem [shape: f32[1,2], index: 2, kind: input, shape index: {}]
  %s3 = inlined_call_operand.vmem [shape: s32[2,1], index: 3, kind: input, shape index: {}]
  %s4 = inlined_call_operand.hbm [shape: f32[2,2], index: 4, kind: output, shape index: {0}]
  %s5 = inlined_call_operand.vmem [shape: f32[2,1], index: 5, kind: output, shape index: {1}]
  %6 = xla_tuple %s4, %s5
  %s7 = sld [smem:[#allocation0]]
  $region34: #{custom_model_forward.1} parent=0
    _
  %s9 = ssub.s32 1, %s7
  %s10 = scalar_select 0, %s9, %s7
  $region1: #{custom_model_forward.1} parent=0
    #allocation2 [shape = 'u8[1024]{0}', space=vmem, size = 0x400, scoped, tag = 'output window, operand 0, single buffered']
    #allocation3 [shape = 's32[1]{0}', space=sflag, size = 0x4, scoped, tag = 'scoped memory for custom_model_forward.1']
    %11 = vsyncpa [#allocation3], 0
    // Predicated region
    $region2: #{custom_model_forward.1} parent=1 // pred_check
      _
    $region3: #{custom_model_forward.1} parent=1 // pred_check_branch
      %13 = sbr.rel (0) target = $region5
    $region4: #{custom_model_forward.1} parent=1 // pred_region
      _
    $region5: #{custom_model_forward.1} parent=1 // pred_fallthru
      _
    // Predicated region
    $region6: #{custom_model_forward.1} parent=1 // pred_check
      _
    $region7: #{custom_model_forward.1} parent=1 // pred_check_branch
      %15 = sbr.rel (0) target = $region9
    $region8: #{custom_model_forward.1} parent=1 // pred_region
      _
    $region9: #{custom_model_forward.1} parent=1 // pred_fallthru
      _
    // Predicated region
    $region10: #{custom_model_forward.1} parent=1 // pred_check
      _
    $region11: #{custom_model_forward.1} parent=1 // pred_check_branch
      %17 = sbr.rel (0) target = $region13
    $region12: #{custom_model_forward.1} parent=1 // pred_region
      _
    $region13: #{custom_model_forward.1} parent=1 // pred_fallthru
      _
    // Predicated region
    $region14: #{custom_model_forward.1} parent=1 // pred_check
      _
    $region15: #{custom_model_forward.1} parent=1 // pred_check_branch
      %19 = sbr.rel (0) target = $region17
    $region16: #{custom_model_forward.1} parent=1 // pred_region
      _
    $region17: #{custom_model_forward.1} parent=1 // pred_fallthru
      _
    %v20 = vld [vmem:[%s0] sm:$0x3f]
    %v21 = vunpack.c.l.bf16 %v20
    %v22 = vunpack.c.h.bf16 %v20
    %v23 = vld [vmem:[%s1] sm:$0xff]
    %v24 = vld [vmem:[%s1 + $0x8] sm:$0xf]
    %v27 = vlaneseq
    %v28 = vshrl.u32 %v27, 7
    %v29 = vsub.s32 0, %v28
    %v30 = vrot.slane %v23, %v29
    %v31 = vlaneseq
    %v32 = vshrl.u32 %v31, 7
    %v33 = vsub.s32 2, %v32
    %v34 = vrot.slane %v23, %v33
    %v35 = vlaneseq
    %v36 = vshrl.u32 %v35, 7
    %v37 = vsub.s32 4, %v36
    %v38 = vrot.slane %v23, %v37
    %v39 = vlaneseq
    %v40 = vshrl.u32 %v39, 7
    %v41 = vsub.s32 6, %v40
    %v42 = vrot.slane %v23, %v41
    %v43 = vlaneseq
    %v44 = vshrl.u32 %v43, 7
    %v45 = vsub.s32 0, %v44
    %v46 = vrot.slane %v24, %v45
    %v47 = vlaneseq
    %v48 = vshrl.u32 %v47, 7
    %v49 = vsub.s32 2, %v48
    %v50 = vrot.slane %v24, %v49
    %v57 = vlaneseq
    %v58 = vshrl.u32 %v57, 7
    %v59 = vsub.s32 0, %v58
    %v60 = vrot.slane %v30, %v59
    %v61 = vlaneseq
    %v62 = vshrl.u32 %v61, 7
    %v63 = vsub.s32 0, %v62
    %v64 = vrot.slane %v34, %v63
    %v65 = vlaneseq
    %v66 = vshrl.u32 %v65, 7
    %v67 = vsub.s32 0, %v66
    %v68 = vrot.slane %v38, %v67
    %v69 = vlaneseq
    %v70 = vshrl.u32 %v69, 7
    %v71 = vsub.s32 0, %v70
    %v72 = vrot.slane %v42, %v71
    %v73 = vlaneseq
    %v74 = vshrl.u32 %v73, 7
    %v75 = vsub.s32 0, %v74
    %v76 = vrot.slane %v46, %v75
    %v77 = vlaneseq
    %v78 = vshrl.u32 %v77, 7
    %v79 = vsub.s32 0, %v78
    %v80 = vrot.slane %v50, %v79
    %v87 = vcombine.low %v60, %v64
    %v88 = vcombine.low %v68, %v72
    %v90 = vunpack.c.l.s4 1983009808
    %v91 = vunpack.c.0.s8 %v90
    %v92 = vlaneseq
    %v93 = vshrl.u32 %v92, 7
    %v94 = vsub.s32 %v91, %v93
    %v95 = vrot.slane %v87, %v94
    %v97 = vunpack.c.l.s4 1983009808
    %v98 = vunpack.c.0.s8 %v97
    %v99 = vlaneseq
    %v100 = vshrl.u32 %v99, 7
    %v101 = vsub.s32 %v98, %v100
    %v102 = vrot.slane %v88, %v101
    %v103 = vcombine.low %v95, %v102
    %v104 = vcombine.low %v76, %v80
    %v106 = vunpack.c.l.s4 1983009808
    %v107 = vunpack.c.0.s8 %v106
    %v108 = vlaneseq
    %v109 = vshrl.u32 %v108, 7
    %v110 = vsub.s32 %v107, %v109
    %v111 = vrot.slane %v104, %v110
    %v114 = vmul.f32 %v21, %v103
    %v115 = vmul.f32 %v22, %v111
    %v118 = vcombine.high %v114, %v114
    %v120 = vunpack.c.l.s4 1983009808
    %v121 = vunpack.c.0.s8 %v120
    %v122 = vlaneseq
    %v123 = vshrl.u32 %v122, 7
    %v124 = vsub.s32 %v121, %v123
    %v125 = vrot.slane %v114, %v124
    %v127 = vunpack.c.l.s4 1983009808
    %v128 = vunpack.c.0.s8 %v127
    %v129 = vlaneseq
    %v130 = vshrl.u32 %v129, 7
    %v131 = vsub.s32 %v128, %v130
    %v132 = vrot.slane %v118, %v131
    %v133 = vcombine.high %v125, %v125
    %v134 = vcombine.high %v132, %v132
    %v136 = vunpack.c.l.s4 1983009808
    %v137 = vunpack.c.0.s8 %v136
    %v138 = vlaneseq
    %v139 = vshrl.u32 %v138, 7
    %v140 = vsub.s32 %v137, %v139
    %v141 = vrot.slane %v115, %v140
    %v142 = vcombine.high %v141, %v141
    %vm149 = vcmask 1041408
    %v150 = vsel %vm149, %v125, 0.0
    %v151 = vsel %vm149, %v133, 0.0
    %v152 = vadd.f32 %v150, %v151
    %v153 = vsel %vm149, %v132, 0.0
    %v154 = vadd.f32 %v152, %v153
    %v155 = vsel %vm149, %v134, 0.0
    %v156 = vadd.f32 %v154, %v155
    %v157 = vsel %vm149, %v141, 0.0
    %v158 = vadd.f32 %v156, %v157
    %v159 = vsel %vm149, %v142, 0.0
    %v160 = vadd.f32 %v158, %v159
    %161 = vadd.xlane.f32.xlu0 %v160
    %v162 = vpop.xlane.xlu0 %161
    %v163 = vlaneseq
    %v164 = vshrl.u32 %v163, 7
    %v165 = vsub.s32 1, %v164
    %v166 = vrot.slane %v23, %v165
    %v167 = vlaneseq
    %v168 = vshrl.u32 %v167, 7
    %v169 = vsub.s32 3, %v168
    %v170 = vrot.slane %v23, %v169
    %v171 = vlaneseq
    %v172 = vshrl.u32 %v171, 7
    %v173 = vsub.s32 5, %v172
    %v174 = vrot.slane %v23, %v173
    %v175 = vlaneseq
    %v176 = vshrl.u32 %v175, 7
    %v177 = vsub.s32 7, %v176
    %v178 = vrot.slane %v23, %v177
    %v179 = vlaneseq
    %v180 = vshrl.u32 %v179, 7
    %v181 = vsub.s32 1, %v180
    %v182 = vrot.slane %v24, %v181
    %v183 = vlaneseq
    %v184 = vshrl.u32 %v183, 7
    %v185 = vsub.s32 3, %v184
    %v186 = vrot.slane %v24, %v185
    %v193 = vlaneseq
    %v194 = vshrl.u32 %v193, 7
    %v195 = vsub.s32 1, %v194
    %v196 = vrot.slane %v166, %v195
    %v197 = vlaneseq
    %v198 = vshrl.u32 %v197, 7
    %v199 = vsub.s32 1, %v198
    %v200 = vrot.slane %v170, %v199
    %v201 = vlaneseq
    %v202 = vshrl.u32 %v201, 7
    %v203 = vsub.s32 1, %v202
    %v204 = vrot.slane %v174, %v203
    %v205 = vlaneseq
    %v206 = vshrl.u32 %v205, 7
    %v207 = vsub.s32 1, %v206
    %v208 = vrot.slane %v178, %v207
    %v209 = vlaneseq
    %v210 = vshrl.u32 %v209, 7
    %v211 = vsub.s32 1, %v210
    %v212 = vrot.slane %v182, %v211
    %v213 = vlaneseq
    %v214 = vshrl.u32 %v213, 7
    %v215 = vsub.s32 1, %v214
    %v216 = vrot.slane %v186, %v215
    %v223 = vcombine.low %v196, %v200
    %v224 = vcombine.low %v204, %v208
    %v226 = vunpack.c.l.s4 1983009808
    %v227 = vunpack.c.0.s8 %v226
    %v228 = vlaneseq
    %v229 = vshrl.u32 %v228, 7
    %v230 = vsub.s32 %v227, %v229
    %v231 = vrot.slane %v223, %v230
    %v233 = vunpack.c.l.s4 1983009808
    %v234 = vunpack.c.0.s8 %v233
    %v235 = vlaneseq
    %v236 = vshrl.u32 %v235, 7
    %v237 = vsub.s32 %v234, %v236
    %v238 = vrot.slane %v224, %v237
    %v239 = vcombine.low %v231, %v238
    %v240 = vcombine.low %v212, %v216
    %v242 = vunpack.c.l.s4 1983009808
    %v243 = vunpack.c.0.s8 %v242
    %v244 = vlaneseq
    %v245 = vshrl.u32 %v244, 7
    %v246 = vsub.s32 %v243, %v245
    %v247 = vrot.slane %v240, %v246
    %v250 = vmul.f32 %v21, %v239
    %v251 = vmul.f32 %v22, %v247
    %v254 = vcombine.high %v250, %v250
    %v256 = vunpack.c.l.s4 1983009808
    %v257 = vunpack.c.0.s8 %v256
    %v258 = vlaneseq
    %v259 = vshrl.u32 %v258, 7
    %v260 = vsub.s32 %v257, %v259
    %v261 = vrot.slane %v250, %v260
    %v263 = vunpack.c.l.s4 1983009808
    %v264 = vunpack.c.0.s8 %v263
    %v265 = vlaneseq
    %v266 = vshrl.u32 %v265, 7
    %v267 = vsub.s32 %v264, %v266
    %v268 = vrot.slane %v254, %v267
    %v269 = vcombine.high %v261, %v261
    %v270 = vcombine.high %v268, %v268
    %v272 = vunpack.c.l.s4 1983009808
    %v273 = vunpack.c.0.s8 %v272
    %v274 = vlaneseq
    %v275 = vshrl.u32 %v274, 7
    %v276 = vsub.s32 %v273, %v275
    %v277 = vrot.slane %v251, %v276
    %v278 = vcombine.high %v277, %v277
    %v285 = vsel %vm149, %v261, 0.0
    %v286 = vsel %vm149, %v269, 0.0
    %v287 = vadd.f32 %v285, %v286
    %v288 = vsel %vm149, %v268, 0.0
    %v289 = vadd.f32 %v287, %v288
    %v290 = vsel %vm149, %v270, 0.0
    %v291 = vadd.f32 %v289, %v290
    %v292 = vsel %vm149, %v277, 0.0
    %v293 = vadd.f32 %v291, %v292
    %v294 = vsel %vm149, %v278, 0.0
    %v295 = vadd.f32 %v293, %v294
    %296 = vadd.xlane.f32.xlu0 %v295
    %v297 = vpop.xlane.xlu0 %296
    %vm298 = vcmask 7168
    %v299 = vsel %vm298, %v162, %v297
    %v300 = vld [vmem:[%s2] sm:$0x1]
    %v302 = vlaneseq
    %v303 = vshrl.u32 %v302, 7
    %v304 = vsub.s32 0, %v303
    %v305 = vrot.slane %v300, %v304
    %v307 = vadd.f32 %v299, %v305
    %vm308 = vcmask 9216
    %309 = vst.msk [vmem:[#allocation2] sm:$0x3] %vm308, %v307
    %v310 = vsel %vm308, %v307, -inf
    %311 = vmax.xlane.f32.xlu0 %v310
    %v312 = vpop.xlane.xlu0 %311
    %v313 = vsub.f32 %v307, %v312
    %v314 = vmul.f32 %v313, 1.442695
    %v315 = vpow.pop %v314
    %v316 = vsel %vm308, %v315, 0.0
    %317 = vadd.xlane.f32.xlu0 %v316
    %v318 = vpop.xlane.xlu0 %317
    %v319 = vlog2.pop %v318
    %v320 = vmul.f32 %v319, 0.6931472
    %v321 = vsub.f32 %v313, %v320
    %v322 = vlaneseq
    %v323 = vand.u32 %v322, 127
    %v324 = vld [vmem:[%s3] sm:$0x3]
    %325 = vset.pattern.permute.xlu0 0
    %326 = vperm.xlu0 %325, %v324
    %v327 = vpop.permute.xlu0 %326
    %vm328 = vcmp.eq.s32.totalorder %v323, %v327
    %v329 = vsel %vm328, 1, 0
    %v330 = vcvt.s32.f32 %v329
    %v331 = vmul.f32 %v330, %v321
    %v332 = vsel %vm308, %v331, 0.0
    %333 = vadd.xlane.f32.xlu0 %v332
    %v334 = vpop.xlane.xlu0 %333
    %v335 = vsub.f32 0.0, %v334
    %vm336 = vcmask 1024
    %337 = vst.msk [vmem:[%s5] sm:$0x3] %vm336, %v335
    // Predicated region
    $region18: #{custom_model_forward.1} parent=1 // pred_check
      _
    $region19: #{custom_model_forward.1} parent=1 // pred_check_branch
      %339 = sbr.rel (0) target = $region21
    $region20: #{custom_model_forward.1} parent=1 // pred_region
      %s341 = ssub.s32 32, 32
      %342 = vsyncadd [#allocation3], %s341
      %s344 = sshll.u32 [#allocation2], 4
      %s345 = int_to_ptr.vmem [resolvable:$true] %s344
      %347 = dma.vmem_to_hbm [thread:$0]  %s345, 32, %s4, [#allocation3]
    $region21: #{custom_model_forward.1} parent=1 // pred_fallthru
      _
    // Predicated region
    $region22: #{custom_model_forward.1} parent=1 // pred_check
      _
    $region23: #{custom_model_forward.1} parent=1 // pred_check_branch
      %349 = sbr.rel (0) target = $region25
    $region24: #{custom_model_forward.1} parent=1 // pred_region
      _
    $region25: #{custom_model_forward.1} parent=1 // pred_fallthru
      _
    // Predicated region
    $region26: #{custom_model_forward.1} parent=1 // pred_check
      _
    $region27: #{custom_model_forward.1} parent=1 // pred_check_branch
      %351 = sbr.rel (0) target = $region29
    $region28: #{custom_model_forward.1} parent=1 // pred_region
      %352 = dma.done [#allocation3], 32
    $region29: #{custom_model_forward.1} parent=1 // pred_fallthru
      _
    // Predicated region
    $region30: #{custom_model_forward.1} parent=1 // pred_check
      _
    $region31: #{custom_model_forward.1} parent=1 // pred_check_branch
      %354 = sbr.rel (0) target = $region33
    $region32: #{custom_model_forward.1} parent=1 // pred_region
      _
    $region33: #{custom_model_forward.1} parent=1 // pred_fallthru
      _
    %355 = vsyncpa [#allocation3], 1

</llo_original>
